<compile_context>
chip_gen: v5e
topology: v5e:2x2
jax: 0.10.0
libtpu: 0.0.40
codegen_flags: <defaults>
</compile_context>

<pallas_src>
import math

import jax
import jax.numpy as jnp
from jax import lax
from jax.experimental import pallas as pl
from jax.experimental.pallas import tpu as pltpu


def _round_up(x, m):
    return ((x + m - 1) // m) * m


def _cdiv(a, b):
    return (a + b - 1) // b


def _tensorcores_per_chip():
    """Best-effort TC-per-chip query (v7x/megacore=2, v5e/v6e=1). Safe fallback 1."""
    try:
        dev = jax.devices()[0]
        for attr in ("num_cores", "core_count"):
            n = getattr(dev, attr, None)
            if isinstance(n, int) and n > 0:
                return n
    except Exception:
        pass
    return 1


def _choose_tiling(B, max_batch_tile, tensorcores):
    """Pick (TB, B_pad, num_steps): TB multiple of 256, few steps, little padding."""
    lane_mult = 256                       # full MXU width on v6e/v7x; harmless on v5e
    max_tile = max(lane_mult, _round_up(max_batch_tile, lane_mult))
    b_min = _round_up(max(B, 1), lane_mult)
    num_steps = _cdiv(b_min, max_tile)
    # On a multi-TC chip keep >=tensorcores steps (a multiple thereof) so the
    # "parallel" batch axis gives every core work -- but only if each core
    # still gets at least one full lane_mult tile.
    if tensorcores > 1 and b_min >= tensorcores * lane_mult:
        num_steps = _round_up(max(num_steps, tensorcores), tensorcores)
    tb = _round_up(_cdiv(b_min, num_steps), lane_mult)
    return tb, num_steps * tb, num_steps


# "NT" dot: contract dim 1 of both operands -> (H, Din) x (TB, Din) = (H, TB).
_CONTRACT_ON_DIN = (((1,), (1,)), ((), ()))


def critic_kernel(x_ref, w1_ref, b1_ref, w2_ref, b2_ref, w3_ref, b3_ref, o_ref):
    # x_ref: (TB, Din) natural layout.     w1: (H, Din)  b1: (H, 1)
    # w2: (H, H)  b2: (H, 1)  w3: (1, H)   b3: (1,) scalar in SMEM.
    # o_ref: (1, TB) lane-dense output slab.
    x = x_ref[...]
    if x.dtype != w1_ref.dtype:                       # only when weights != f32
        x = x.astype(w1_ref.dtype)
    # Layer 1: contract on Din in-kernel (no wrapper transpose) -> (H, TB).
    h1 = lax.dot_general(w1_ref[...], x, _CONTRACT_ON_DIN,
                         preferred_element_type=jnp.float32) + b1_ref[...]
    h1 = jnp.maximum(h1, 0.0)                         # (H, TB), f32 VPU
    if h1.dtype != w2_ref.dtype:
        h1 = h1.astype(w2_ref.dtype)
    h2 = jnp.dot(w2_ref[...], h1, preferred_element_type=jnp.float32) + b2_ref[...]
    h2 = jnp.maximum(h2, 0.0)
    if h2.dtype != w3_ref.dtype:
        h2 = h2.astype(w3_ref.dtype)
    o_ref[...] = (jnp.dot(w3_ref[...], h2, preferred_element_type=jnp.float32)
                  + b3_ref[0]).astype(o_ref.dtype)    # (1, TB) unmasked vst


def critic_forward(obs_and_acts, params, *, max_batch_tile=4096):
    """obs_and_acts: (B, input_size).  Returns (B, 1), matching the PyTorch module."""
    B, Din = obs_and_acts.shape
    w1, b1, w2, b2, w3, b3 = (params["w1"], params["b1"], params["w2"],
                              params["b2"], params["w3"], params["b3"])
    H = w1.shape[0]

    TB, B_pad, num_steps = _choose_tiling(B, max_batch_tile, _tensorcores_per_chip())

    # Only padding (no transpose) on the wrapper side; padded rows are sliced off.
    x = obs_and_acts
    if B_pad != B:
        x = jnp.pad(x, ((0, B_pad - B), (0, 0)))

    flops = 2 * B_pad * (Din * H + H * H + H)
    bytes_accessed = 4 * (Din * B_pad + B_pad) + sum(
        int(p.size) * p.dtype.itemsize for p in (w1, b1, w2, b2, w3, b3))

    out = pl.pallas_call(
        critic_kernel,
        out_shape=jax.ShapeDtypeStruct((1, B_pad), jnp.float32),
        grid=(num_steps,),
        in_specs=[
            pl.BlockSpec((TB, Din), lambda i: (i, 0)),           # x, natural layout
            pl.BlockSpec((H, Din), lambda i: (0, 0)),            # W1 (VMEM-resident)
            pl.BlockSpec((H, 1), lambda i: (0, 0)),              # b1 column
            pl.BlockSpec((H, H), lambda i: (0, 0)),              # W2 (VMEM-resident)
            pl.BlockSpec((H, 1), lambda i: (0, 0)),              # b2 column
            pl.BlockSpec((1, H), lambda i: (0, 0)),              # W3 row
            pl.BlockSpec(memory_space=pltpu.MemorySpace.SMEM),   # b3 scalar in SMEM
        ],
        out_specs=pl.BlockSpec((1, TB), lambda i: (0, i)),
        compiler_params=pltpu.CompilerParams(
            dimension_semantics=("parallel",),                   # megacore on v7x
            vmem_limit_bytes=32 * 1024 * 1024),
        cost_estimate=pl.CostEstimate(flops=flops, transcendentals=0,
                                      bytes_accessed=bytes_accessed),
    )(x, w1, b1, w2, b2, w3, b3)

    return out[0, :B].reshape(B, 1)


def init_params(all_obs_dims, all_acts_dims, hidden_dim_width, key,
                weight_dtype=jnp.float32):
    """nn.Linear default init: U(-1/sqrt(fan_in), 1/sqrt(fan_in)).

    Weights keep the PyTorch (out_features, in_features) orientation, which is
    exactly what the kernel consumes.  b1/b2 are (H, 1) columns (lane-broadcast
    in-kernel); b3 is a (1,) scalar for SMEM.  Keep weight_dtype=f32 at these
    sizes (bf16 only adds pack/unpack work and v5e has no bf16 VPU path).
    """
    input_size = sum(all_obs_dims) + sum(all_acts_dims)
    H = hidden_dim_width
    shapes = [(H, input_size), (H, H), (1, H)]
    params = {}
    for i, (fan_out, fan_in) in enumerate(shapes, start=1):
        key, kw, kb = jax.random.split(key, 3)
        bound = 1.0 / math.sqrt(fan_in)
        params[f"w{i}"] = jax.random.uniform(
            kw, (fan_out, fan_in), weight_dtype, -bound, bound)
        bshape = (1,) if fan_out == 1 else (fan_out, 1)
        params[f"b{i}"] = jax.random.uniform(kb, bshape, jnp.float32, -bound, bound)
    return params


def hard_update(target_params, source_params):
    return jax.tree_util.tree_map(lambda _t, s: s, target_params, source_params)


def soft_update(target_params, source_params, t):
    return jax.tree_util.tree_map(lambda tp, sp: (1.0 - t) * tp + t * sp,
                                  target_params, source_params)


def critic_reference(x, p):
    h1 = jnp.maximum(x @ p["w1"].T.astype(jnp.float32) + p["b1"][:, 0], 0.0)
    h2 = jnp.maximum(h1 @ p["w2"].T.astype(jnp.float32) + p["b2"][:, 0], 0.0)
    return h2 @ p["w3"].T.astype(jnp.float32) + p["b3"]


if __name__ == "__main__":
    # Small synthetic multi-agent setup: 2 agents, obs dims [6, 6], act dims [2, 2]
    all_obs_dims = [6, 6]
    all_acts_dims = [2, 2]
    hidden_dim_width = 32
    batch = 8
    input_size = sum(all_obs_dims) + sum(all_acts_dims)   # 16

    key = jax.random.PRNGKey(0)
    key, kx = jax.random.split(key)
    obs_and_acts = jax.random.normal(kx, (batch, input_size), jnp.float32)

    params = init_params(all_obs_dims, all_acts_dims, hidden_dim_width, key)

    out = jax.block_until_ready(critic_forward(obs_and_acts, params))
    ref = critic_reference(obs_and_acts, params)

    assert out.shape == (batch, 1), out.shape
    assert jnp.allclose(out, ref, atol=1e-4, rtol=1e-4), "mismatch vs reference"

    print("KERNEL_OK")
</pallas_src>

<mosaic_0001>
module attributes {stable_mosaic.version = 11 : i64} {
  func.func @critic_kernel(%arg0: i32, %arg1: memref<256x16xf32, #tpu.memory_space<vmem>>, %arg2: memref<32x16xf32, #tpu.memory_space<vmem>>, %arg3: memref<32x1xf32, #tpu.memory_space<vmem>>, %arg4: memref<32x32xf32, #tpu.memory_space<vmem>>, %arg5: memref<32x1xf32, #tpu.memory_space<vmem>>, %arg6: memref<1x32xf32, #tpu.memory_space<vmem>>, %arg7: memref<1xf32, #tpu.memory_space<smem>>, %arg8: memref<1x256xf32, #tpu.memory_space<vmem>>) attributes {dimension_semantics = [#tpu.dimension_semantics<parallel>], iteration_bounds = array<i64: 1>, scalar_prefetch = 0 : i64, scratch_operands = 0 : i64, tpu.core_type = #tpu.core_type<tc>, window_params = [{transform_indices = @transform_0, window_bounds = array<i64: 256, 16>}, {pipeline_mode = #tpu.pipeline_mode<synchronous>, transform_indices = @transform_1, window_bounds = array<i64: 32, 16>}, {pipeline_mode = #tpu.pipeline_mode<synchronous>, transform_indices = @transform_2, window_bounds = array<i64: 32, 1>}, {pipeline_mode = #tpu.pipeline_mode<synchronous>, transform_indices = @transform_3, window_bounds = array<i64: 32, 32>}, {pipeline_mode = #tpu.pipeline_mode<synchronous>, transform_indices = @transform_4, window_bounds = array<i64: 32, 1>}, {pipeline_mode = #tpu.pipeline_mode<synchronous>, transform_indices = @transform_5, window_bounds = array<i64: 1, 32>}, {transform_indices = @transform_6, window_bounds = array<i64: 1>}, {transform_indices = @transform_7, window_bounds = array<i64: 1, 256>}]} {
    %c0 = arith.constant 0 : index
    %c0_0 = arith.constant 0 : index
    %0 = vector.load %arg1[%c0, %c0_0] : memref<256x16xf32, #tpu.memory_space<vmem>>, vector<256x16xf32>
    %c0_1 = arith.constant 0 : index
    %c0_2 = arith.constant 0 : index
    %1 = vector.load %arg2[%c0_1, %c0_2] : memref<32x16xf32, #tpu.memory_space<vmem>>, vector<32x16xf32>
    %cst = arith.constant dense<0.000000e+00> : vector<32x256xf32>
    %2 = tpu.matmul %1, %0, %cst {dimension_numbers = #tpu.dot_dimension_numbers<[1], [1], [0], [0], [0, 0, 1, 0], [], []>} : vector<32x16xf32>, vector<256x16xf32>, vector<32x256xf32> -> vector<32x256xf32>
    %c0_3 = arith.constant 0 : index
    %c0_4 = arith.constant 0 : index
    %3 = vector.load %arg3[%c0_3, %c0_4] : memref<32x1xf32, #tpu.memory_space<vmem>>, vector<32x1xf32>
    %4 = vector.broadcast %3 : vector<32x1xf32> to vector<32x256xf32>
    %5 = arith.addf %2, %4 : vector<32x256xf32>
    %cst_5 = arith.constant 0.000000e+00 : f32
    %6 = vector.broadcast %cst_5 : f32 to vector<32x256xf32>
    %7 = arith.maximumf %5, %6 : vector<32x256xf32>
    %c0_6 = arith.constant 0 : index
    %c0_7 = arith.constant 0 : index
    %8 = vector.load %arg4[%c0_6, %c0_7] : memref<32x32xf32, #tpu.memory_space<vmem>>, vector<32x32xf32>
    %cst_8 = arith.constant dense<0.000000e+00> : vector<32x256xf32>
    %9 = tpu.matmul %8, %7, %cst_8 {dimension_numbers = #tpu.dot_dimension_numbers<[1], [0], [0], [1], [0, 0, 1, 1], [], []>} : vector<32x32xf32>, vector<32x256xf32>, vector<32x256xf32> -> vector<32x256xf32>
    %c0_9 = arith.constant 0 : index
    %c0_10 = arith.constant 0 : index
    %10 = vector.load %arg5[%c0_9, %c0_10] : memref<32x1xf32, #tpu.memory_space<vmem>>, vector<32x1xf32>
    %11 = vector.broadcast %10 : vector<32x1xf32> to vector<32x256xf32>
    %12 = arith.addf %9, %11 : vector<32x256xf32>
    %cst_11 = arith.constant 0.000000e+00 : f32
    %13 = vector.broadcast %cst_11 : f32 to vector<32x256xf32>
    %14 = arith.maximumf %12, %13 : vector<32x256xf32>
    %c0_12 = arith.constant 0 : index
    %c0_13 = arith.constant 0 : index
    %15 = vector.load %arg6[%c0_12, %c0_13] : memref<1x32xf32, #tpu.memory_space<vmem>>, vector<1x32xf32>
    %cst_14 = arith.constant dense<0.000000e+00> : vector<1x256xf32>
    %16 = tpu.matmul %15, %14, %cst_14 {dimension_numbers = #tpu.dot_dimension_numbers<[1], [0], [0], [1], [0, 0, 1, 1], [], []>} : vector<1x32xf32>, vector<32x256xf32>, vector<1x256xf32> -> vector<1x256xf32>
    %c0_15 = arith.constant 0 : index
    %17 = memref.load %arg7[%c0_15] : memref<1xf32, #tpu.memory_space<smem>>
    %18 = vector.broadcast %17 : f32 to vector<1x256xf32>
    %19 = arith.addf %16, %18 : vector<1x256xf32>
    %c0_16 = arith.constant 0 : index
    %c0_17 = arith.constant 0 : index
    %20 = vector.load %arg8[%c0_16, %c0_17] : memref<1x256xf32, #tpu.memory_space<vmem>>, vector<1x256xf32>
    tpu.vector_store %arg8[%c0_16, %c0_17], %19 {strides = array<i32>} : memref<1x256xf32, #tpu.memory_space<vmem>>, vector<1x256xf32>,
    return
  }
  func.func @transform_0(%arg0: i32) -> (i32, i32) {
    %c0_i32 = arith.constant 0 : i32
    %c0_i32_0 = arith.constant 0 : i32
    return %arg0, %c0_i32 : i32, i32
  }
  func.func @transform_1(%arg0: i32) -> (i32, i32) {
    %c0_i32 = arith.constant 0 : i32
    %c0_i32_0 = arith.constant 0 : i32
    %c0_i32_1 = arith.constant 0 : i32
    return %c0_i32, %c0_i32_0 : i32, i32
  }
  func.func @transform_2(%arg0: i32) -> (i32, i32) {
    %c0_i32 = arith.constant 0 : i32
    %c0_i32_0 = arith.constant 0 : i32
    %c0_i32_1 = arith.constant 0 : i32
    return %c0_i32, %c0_i32_0 : i32, i32
  }
  func.func @transform_3(%arg0: i32) -> (i32, i32) {
    %c0_i32 = arith.constant 0 : i32
    %c0_i32_0 = arith.constant 0 : i32
    %c0_i32_1 = arith.constant 0 : i32
    return %c0_i32, %c0_i32_0 : i32, i32
  }
  func.func @transform_4(%arg0: i32) -> (i32, i32) {
    %c0_i32 = arith.constant 0 : i32
    %c0_i32_0 = arith.constant 0 : i32
    %c0_i32_1 = arith.constant 0 : i32
    return %c0_i32, %c0_i32_0 : i32, i32
  }
  func.func @transform_5(%arg0: i32) -> (i32, i32) {
    %c0_i32 = arith.constant 0 : i32
    %c0_i32_0 = arith.constant 0 : i32
    %c0_i32_1 = arith.constant 0 : i32
    return %c0_i32, %c0_i32_0 : i32, i32
  }
  func.func @transform_6(%arg0: i32) -> i32 {
    %c0_i32 = arith.constant 0 : i32
    %c0_i32_0 = arith.constant 0 : i32
    return %c0_i32 : i32
  }
  func.func @transform_7(%arg0: i32) -> (i32, i32) {
    %c0_i32 = arith.constant 0 : i32
    %c0_i32_0 = arith.constant 0 : i32
    return %c0_i32, %arg0 : i32, i32
  }
}

</mosaic_0001>

<llo_original>
// kernel: tpu_custom_call.1
$region0: #{tpu_custom_call.1}
  #allocation0 [shape = 'u32[]', space=smem, size = 0x4, offset = 0x4, fixed_abs, tag = 'smem constant byte address 0x4 - core index']
  #allocation1 [shape = 'u32[72,128]{1,0:T(1,128)}', space=vmem, size = 0x9000, scoped, tag = 'internal scratch']
  #allocation2 [shape = 'f32[1]{0:T(128)S(6)}', space=smem, size = 0x200, scoped, tag = 'scoped memory for tpu_custom_call.1']
  %s0 = inlined_call_operand.vmem [shape: f32[256,16], index: 0, kind: input, shape index: {}]
  %s1 = inlined_call_operand.vmem [shape: f32[32,16], index: 1, kind: input, shape index: {}]
  %s2 = inlined_call_operand.vmem [shape: f32[32,1], index: 2, kind: input, shape index: {}]
  %s3 = inlined_call_operand.vmem [shape: f32[32,32], index: 3, kind: input, shape index: {}]
  %s4 = inlined_call_operand.vmem [shape: f32[32,1], index: 4, kind: input, shape index: {}]
  %s5 = inlined_call_operand.vmem [shape: f32[1,32], index: 5, kind: input, shape index: {}]
  %s6 = inlined_call_operand.<no memory space> [shape: f32[1], index: 6, kind: input, shape index: {}]
  %s7 = inlined_call_operand.hbm [shape: f32[1,256], index: 7, kind: output, shape index: {}]
  %s8 = sld [smem:[#allocation0]]
  $region38: #{tpu_custom_call.1} parent=0
    _
  %s10 = ssub.s32 1, %s8
  %s11 = scalar_select 0, %s10, %s8
  %12 = sst [smem:[#allocation2]] %s6
  $region1: #{tpu_custom_call.1} parent=0
    #allocation3 [shape = 'u8[1024]{0}', space=vmem, size = 0x400, scoped, tag = 'output window, operand 0, single buffered']
    #allocation4 [shape = 's32[1]{0}', space=sflag, size = 0x4, scoped, tag = 'scoped memory for tpu_custom_call.1']
    %13 = vsyncpa [#allocation4], 0
    // Predicated region
    $region2: #{tpu_custom_call.1} parent=1 // pred_check
      _
    $region3: #{tpu_custom_call.1} parent=1 // pred_check_branch
      %15 = sbr.rel (0) target = $region5
    $region4: #{tpu_custom_call.1} parent=1 // pred_region
      _
    $region5: #{tpu_custom_call.1} parent=1 // pred_fallthru
      _
    // Predicated region
    $region6: #{tpu_custom_call.1} parent=1 // pred_check
      _
    $region7: #{tpu_custom_call.1} parent=1 // pred_check_branch
      %17 = sbr.rel (0) target = $region9
    $region8: #{tpu_custom_call.1} parent=1 // pred_region
      _
    $region9: #{tpu_custom_call.1} parent=1 // pred_fallthru
      _
    // Predicated region
    $region10: #{tpu_custom_call.1} parent=1 // pred_check
      _
    $region11: #{tpu_custom_call.1} parent=1 // pred_check_branch
      %19 = sbr.rel (0) target = $region13
    $region12: #{tpu_custom_call.1} parent=1 // pred_region
      _
    $region13: #{tpu_custom_call.1} parent=1 // pred_fallthru
      _
    // Predicated region
    $region14: #{tpu_custom_call.1} parent=1 // pred_check
      _
    $region15: #{tpu_custom_call.1} parent=1 // pred_check_branch
      %21 = sbr.rel (0) target = $region17
    $region16: #{tpu_custom_call.1} parent=1 // pred_region
      _
    $region17: #{tpu_custom_call.1} parent=1 // pred_fallthru
      _
    // Predicated region
    $region18: #{tpu_custom_call.1} parent=1 // pred_check
      _
    $region19: #{tpu_custom_call.1} parent=1 // pred_check_branch
      %23 = sbr.rel (0) target = $region21
    $region20: #{tpu_custom_call.1} parent=1 // pred_region
      _
    $region21: #{tpu_custom_call.1} parent=1 // pred_fallthru
      _
    // Predicated region
    $region22: #{tpu_custom_call.1} parent=1 // pred_check
      _
    $region23: #{tpu_custom_call.1} parent=1 // pred_check_branch
      %25 = sbr.rel (0) target = $region25
    $region24: #{tpu_custom_call.1} parent=1 // pred_region
      _
    $region25: #{tpu_custom_call.1} parent=1 // pred_fallthru
      _
    // Predicated region
    $region26: #{tpu_custom_call.1} parent=1 // pred_check
      _
    $region27: #{tpu_custom_call.1} parent=1 // pred_check_branch
      %27 = sbr.rel (0) target = $region29
    $region28: #{tpu_custom_call.1} parent=1 // pred_region
      _
    $region29: #{tpu_custom_call.1} parent=1 // pred_fallthru
      _
    %v28 = vld [vmem:[%s0] sm:$0xff]
    %v29 = vld [vmem:[%s0 + $0x8] sm:$0xff]
    %v30 = vld [vmem:[%s0 + $0x10] sm:$0xff]
    %v31 = vld [vmem:[%s0 + $0x18] sm:$0xff]
    %v32 = vld [vmem:[%s0 + $0x20] sm:$0xff]
    %v33 = vld [vmem:[%s0 + $0x28] sm:$0xff]
    %v34 = vld [vmem:[%s0 + $0x30] sm:$0xff]
    %v35 = vld [vmem:[%s0 + $0x38] sm:$0xff]
    %v36 = vld [vmem:[%s0 + $0x40] sm:$0xff]
    %v37 = vld [vmem:[%s0 + $0x48] sm:$0xff]
    %v38 = vld [vmem:[%s0 + $0x50] sm:$0xff]
    %v39 = vld [vmem:[%s0 + $0x58] sm:$0xff]
    %v40 = vld [vmem:[%s0 + $0x60] sm:$0xff]
    %v41 = vld [vmem:[%s0 + $0x68] sm:$0xff]
    %v42 = vld [vmem:[%s0 + $0x70] sm:$0xff]
    %v43 = vld [vmem:[%s0 + $0x78] sm:$0xff]
    %v44 = vld [vmem:[%s0 + $0x80] sm:$0xff]
    %v45 = vld [vmem:[%s0 + $0x88] sm:$0xff]
    %v46 = vld [vmem:[%s0 + $0x90] sm:$0xff]
    %v47 = vld [vmem:[%s0 + $0x98] sm:$0xff]
    %v48 = vld [vmem:[%s0 + $0xa0] sm:$0xff]
    %v49 = vld [vmem:[%s0 + $0xa8] sm:$0xff]
    %v50 = vld [vmem:[%s0 + $0xb0] sm:$0xff]
    %v51 = vld [vmem:[%s0 + $0xb8] sm:$0xff]
    %v52 = vld [vmem:[%s0 + $0xc0] sm:$0xff]
    %v53 = vld [vmem:[%s0 + $0xc8] sm:$0xff]
    %v54 = vld [vmem:[%s0 + $0xd0] sm:$0xff]
    %v55 = vld [vmem:[%s0 + $0xd8] sm:$0xff]
    %v56 = vld [vmem:[%s0 + $0xe0] sm:$0xff]
    %v57 = vld [vmem:[%s0 + $0xe8] sm:$0xff]
    %v58 = vld [vmem:[%s0 + $0xf0] sm:$0xff]
    %v59 = vld [vmem:[%s0 + $0xf8] sm:$0xff]
    %v60 = vld [vmem:[%s1] sm:$0xff]
    %v61 = vld [vmem:[%s1 + $0x8] sm:$0xff]
    %v62 = vld [vmem:[%s1 + $0x10] sm:$0xff]
    %v63 = vld [vmem:[%s1 + $0x18] sm:$0xff]
    %v64 = vld [vmem:[%s2] sm:$0xff]
    %v65 = vld [vmem:[%s2 + $0x8] sm:$0xff]
    %v66 = vld [vmem:[%s2 + $0x10] sm:$0xff]
    %v67 = vld [vmem:[%s2 + $0x18] sm:$0xff]
    %69 = vset.pattern.permute.xlu0 0
    %70 = vperm.xlu0 %69, %v64
    %v71 = vpop.permute.xlu0 %70
    %74 = vset.pattern.permute.xlu0 0
    %75 = vperm.xlu0 %74, %v65
    %v76 = vpop.permute.xlu0 %75
    %79 = vset.pattern.permute.xlu0 0
    %80 = vperm.xlu0 %79, %v66
    %v81 = vpop.permute.xlu0 %80
    %84 = vset.pattern.permute.xlu0 0
    %85 = vperm.xlu0 %84, %v67
    %v86 = vpop.permute.xlu0 %85
    %vm88 = vcmask 130048
    %v90 = vsel %vm88, %v60, 0
    %v93 = vsel %vm88, %v61, 0
    %v96 = vsel %vm88, %v62, 0
    %v99 = vsel %vm88, %v63, 0
    %v102 = vsel %vm88, %v28, 0
    %v105 = vsel %vm88, %v29, 0
    %v108 = vsel %vm88, %v30, 0
    %v111 = vsel %vm88, %v31, 0
    %v114 = vsel %vm88, %v32, 0
    %v117 = vsel %vm88, %v33, 0
    %v120 = vsel %vm88, %v34, 0
    %v123 = vsel %vm88, %v35, 0
    %v126 = vsel %vm88, %v36, 0
    %v129 = vsel %vm88, %v37, 0
    %v132 = vsel %vm88, %v38, 0
    %v135 = vsel %vm88, %v39, 0
    %v138 = vsel %vm88, %v40, 0
    %v141 = vsel %vm88, %v41, 0
    %v144 = vsel %vm88, %v42, 0
    %v147 = vsel %vm88, %v43, 0
    %v150 = vsel %vm88, %v44, 0
    %v153 = vsel %vm88, %v45, 0
    %v156 = vsel %vm88, %v46, 0
    %v159 = vsel %vm88, %v47, 0
    %v162 = vsel %vm88, %v48, 0
    %v165 = vsel %vm88, %v49, 0
    %v168 = vsel %vm88, %v50, 0
    %v171 = vsel %vm88, %v51, 0
    %v174 = vsel %vm88, %v52, 0
    %v177 = vsel %vm88, %v53, 0
    %v180 = vsel %vm88, %v54, 0
    %v183 = vsel %vm88, %v55, 0
    %v186 = vsel %vm88, %v56, 0
    %v189 = vsel %vm88, %v57, 0
    %v192 = vsel %vm88, %v58, 0
    %v195 = vsel %vm88, %v59, 0
    %197 = vmatpush.xpose.msra.mxu0 %v147
    %198 = vmatpush.xpose.msra.mxu0 %v144
    %199 = vmatpush.xpose.msra.mxu0 %v141
    %200 = vmatpush.xpose.msra.mxu0 %v138
    %201 = vmatpush.xpose.msra.mxu0 %v135
    %202 = vmatpush.xpose.msra.mxu0 %v132
    %203 = vmatpush.xpose.msra.mxu0 %v129
    %204 = vmatpush.xpose.msra.mxu0 %v126
    %205 = vmatpush.xpose.msra.mxu0 %v123
    %206 = vmatpush.xpose.msra.mxu0 %v120
    %207 = vmatpush.xpose.msra.mxu0 %v117
    %208 = vmatpush.xpose.msra.mxu0 %v114
    %209 = vmatpush.xpose.msra.mxu0 %v111
    %210 = vmatpush.xpose.msra.mxu0 %v108
    %211 = vmatpush.xpose.msra.mxu0 %v105
    %212 = vmatpush.xpose.msra.mxu0 %v102
    %213 = vmatmul.f32.gmra.mxu0 %v90
    %v214 = vpop.f32.mrf.mxu0
    %v215 = vadd.f32 %v71, %v214
    %216 = vmatmul.f32.gmra.mxu0 %v93
    %v217 = vpop.f32.mrf.mxu0
    %v218 = vadd.f32 %v76, %v217
    %219 = vmatmul.f32.gmra.mxu0 %v96
    %v220 = vpop.f32.mrf.mxu0
    %v221 = vadd.f32 %v81, %v220
    %222 = vmatmul.f32.gmra.mxu0 %v99
    %v223 = vpop.f32.mrf.mxu0
    %v224 = vadd.f32 %v86, %v223
    %225 = vdwg.mxu0
    %226 = vmatpush.xpose.msra.mxu0 %v195
    %227 = vmatpush.xpose.msra.mxu0 %v192
    %228 = vmatpush.xpose.msra.mxu0 %v189
    %229 = vmatpush.xpose.msra.mxu0 %v186
    %230 = vmatpush.xpose.msra.mxu0 %v183
    %231 = vmatpush.xpose.msra.mxu0 %v180
    %232 = vmatpush.xpose.msra.mxu0 %v177
    %233 = vmatpush.xpose.msra.mxu0 %v174
    %234 = vmatpush.xpose.msra.mxu0 %v171
    %235 = vmatpush.xpose.msra.mxu0 %v168
    %236 = vmatpush.xpose.msra.mxu0 %v165
    %237 = vmatpush.xpose.msra.mxu0 %v162
    %238 = vmatpush.xpose.msra.mxu0 %v159
    %239 = vmatpush.xpose.msra.mxu0 %v156
    %240 = vmatpush.xpose.msra.mxu0 %v153
    %241 = vmatpush.xpose.msra.mxu0 %v150
    %242 = vmatmul.f32.gmra.mxu0 %v90
    %v243 = vpop.f32.mrf.mxu0
    %v244 = vadd.f32 %v71, %v243
    %245 = vmatmul.f32.gmra.mxu0 %v93
    %v246 = vpop.f32.mrf.mxu0
    %v247 = vadd.f32 %v76, %v246
    %248 = vmatmul.f32.gmra.mxu0 %v96
    %v249 = vpop.f32.mrf.mxu0
    %v250 = vadd.f32 %v81, %v249
    %251 = vmatmul.f32.gmra.mxu0 %v99
    %v252 = vpop.f32.mrf.mxu0
    %v253 = vadd.f32 %v86, %v252
    %254 = vdwg.mxu0
    %v255 = vmax.f32 %v215, 0.0
    %v256 = vmax.f32 %v244, 0.0
    %v257 = vmax.f32 %v218, 0.0
    %v258 = vmax.f32 %v247, 0.0
    %v259 = vmax.f32 %v221, 0.0
    %v260 = vmax.f32 %v250, 0.0
    %v261 = vmax.f32 %v224, 0.0
    %v262 = vmax.f32 %v253, 0.0
    %v263 = vld [vmem:[%s3] sm:$0xff]
    %v264 = vld [vmem:[%s3 + $0x8] sm:$0xff]
    %v265 = vld [vmem:[%s3 + $0x10] sm:$0xff]
    %v266 = vld [vmem:[%s3 + $0x18] sm:$0xff]
    %v267 = vld [vmem:[%s4] sm:$0xff]
    %v268 = vld [vmem:[%s4 + $0x8] sm:$0xff]
    %v269 = vld [vmem:[%s4 + $0x10] sm:$0xff]
    %v270 = vld [vmem:[%s4 + $0x18] sm:$0xff]
    %272 = vset.pattern.permute.xlu0 0
    %273 = vperm.xlu0 %272, %v267
    %v274 = vpop.permute.xlu0 %273
    %277 = vset.pattern.permute.xlu0 0
    %278 = vperm.xlu0 %277, %v268
    %v279 = vpop.permute.xlu0 %278
    %282 = vset.pattern.permute.xlu0 0
    %283 = vperm.xlu0 %282, %v269
    %v284 = vpop.permute.xlu0 %283
    %287 = vset.pattern.permute.xlu0 0
    %288 = vperm.xlu0 %287, %v270
    %v289 = vpop.permute.xlu0 %288
    %vm291 = vcmask 261120
    %v293 = vsel %vm291, %v263, 0
    %v296 = vsel %vm291, %v264, 0
    %v299 = vsel %vm291, %v265, 0
    %v302 = vsel %vm291, %v266, 0
    %304 = vmatpush.msra.mxu0 0.0
    %305 = vmatpush.msra.mxu0 0.0
    %306 = vmatpush.msra.mxu0 0.0
    %307 = vmatpush.msra.mxu0 0.0
    %308 = vmatpush.msra.mxu0 0.0
    %309 = vmatpush.msra.mxu0 0.0
    %310 = vmatpush.msra.mxu0 0.0
    %311 = vmatpush.msra.mxu0 0.0
    %312 = vmatpush.msra.mxu0 0.0
    %313 = vmatpush.msra.mxu0 0.0
    %314 = vmatpush.msra.mxu0 0.0
    %315 = vmatpush.msra.mxu0 0.0
    %316 = vmatpush.msra.mxu0 %v261
    %317 = vmatpush.msra.mxu0 %v259
    %318 = vmatpush.msra.mxu0 %v257
    %319 = vmatpush.msra.mxu0 %v255
    %320 = vmatmul.f32.gmra.mxu0 %v293
    %v321 = vpop.f32.mrf.mxu0
    %v322 = vadd.f32 %v274, %v321
    %323 = vmatmul.f32.gmra.mxu0 %v296
    %v324 = vpop.f32.mrf.mxu0
    %v325 = vadd.f32 %v279, %v324
    %326 = vmatmul.f32.gmra.mxu0 %v299
    %v327 = vpop.f32.mrf.mxu0
    %v328 = vadd.f32 %v284, %v327
    %329 = vmatmul.f32.gmra.mxu0 %v302
    %v330 = vpop.f32.mrf.mxu0
    %v331 = vadd.f32 %v289, %v330
    %332 = vdwg.mxu0
    %333 = vmatpush.msra.mxu0 0.0
    %334 = vmatpush.msra.mxu0 0.0
    %335 = vmatpush.msra.mxu0 0.0
    %336 = vmatpush.msra.mxu0 0.0
    %337 = vmatpush.msra.mxu0 0.0
    %338 = vmatpush.msra.mxu0 0.0
    %339 = vmatpush.msra.mxu0 0.0
    %340 = vmatpush.msra.mxu0 0.0
    %341 = vmatpush.msra.mxu0 0.0
    %342 = vmatpush.msra.mxu0 0.0
    %343 = vmatpush.msra.mxu0 0.0
    %344 = vmatpush.msra.mxu0 0.0
    %345 = vmatpush.msra.mxu0 %v262
    %346 = vmatpush.msra.mxu0 %v260
    %347 = vmatpush.msra.mxu0 %v258
    %348 = vmatpush.msra.mxu0 %v256
    %349 = vmatmul.f32.gmra.mxu0 %v293
    %v350 = vpop.f32.mrf.mxu0
    %v351 = vadd.f32 %v274, %v350
    %352 = vmatmul.f32.gmra.mxu0 %v296
    %v353 = vpop.f32.mrf.mxu0
    %v354 = vadd.f32 %v279, %v353
    %355 = vmatmul.f32.gmra.mxu0 %v299
    %v356 = vpop.f32.mrf.mxu0
    %v357 = vadd.f32 %v284, %v356
    %358 = vmatmul.f32.gmra.mxu0 %v302
    %v359 = vpop.f32.mrf.mxu0
    %v360 = vadd.f32 %v289, %v359
    %361 = vdwg.mxu0
    %v362 = vmax.f32 %v322, 0.0
    %v363 = vmax.f32 %v351, 0.0
    %v364 = vmax.f32 %v325, 0.0
    %v365 = vmax.f32 %v354, 0.0
    %v366 = vmax.f32 %v328, 0.0
    %v367 = vmax.f32 %v357, 0.0
    %v368 = vmax.f32 %v331, 0.0
    %v369 = vmax.f32 %v360, 0.0
    %v370 = vld [vmem:[%s5] sm:$0x1]
    %s371 = sld [smem:[#allocation2]]
    %v372 = vstv %s371
    %v374 = vsel %vm291, %v370, 0
    %376 = vmatpush.msra.mxu0 0.0
    %377 = vmatpush.msra.mxu0 0.0
    %378 = vmatpush.msra.mxu0 0.0
    %379 = vmatpush.msra.mxu0 0.0
    %380 = vmatpush.msra.mxu0 0.0
    %381 = vmatpush.msra.mxu0 0.0
    %382 = vmatpush.msra.mxu0 0.0
    %383 = vmatpush.msra.mxu0 0.0
    %384 = vmatpush.msra.mxu0 0.0
    %385 = vmatpush.msra.mxu0 0.0
    %386 = vmatpush.msra.mxu0 0.0
    %387 = vmatpush.msra.mxu0 0.0
    %388 = vmatpush.msra.mxu0 %v368
    %389 = vmatpush.msra.mxu0 %v366
    %390 = vmatpush.msra.mxu0 %v364
    %391 = vmatpush.msra.mxu0 %v362
    %392 = vmatmul.f32.gmra.mxu0 %v374
    %v393 = vpop.f32.mrf.mxu0
    %v394 = vadd.f32 %v372, %v393
    %395 = vdwg.mxu0
    %396 = vmatpush.msra.mxu0 0.0
    %397 = vmatpush.msra.mxu0 0.0
    %398 = vmatpush.msra.mxu0 0.0
    %399 = vmatpush.msra.mxu0 0.0
    %400 = vmatpush.msra.mxu0 0.0
    %401 = vmatpush.msra.mxu0 0.0
    %402 = vmatpush.msra.mxu0 0.0
    %403 = vmatpush.msra.mxu0 0.0
    %404 = vmatpush.msra.mxu0 0.0
    %405 = vmatpush.msra.mxu0 0.0
    %406 = vmatpush.msra.mxu0 0.0
    %407 = vmatpush.msra.mxu0 0.0
    %408 = vmatpush.msra.mxu0 %v369
    %409 = vmatpush.msra.mxu0 %v367
    %410 = vmatpush.msra.mxu0 %v365
    %411 = vmatpush.msra.mxu0 %v363
    %412 = vmatmul.f32.gmra.mxu0 %v374
    %v413 = vpop.f32.mrf.mxu0
    %v414 = vadd.f32 %v372, %v413
    %415 = vdwg.mxu0
    %v418 = vrot.slane %v414, 7
    %vm419 = vcmask 1040384
    %v420 = vsel %vm419, %v394, %v418
    %v422 = vlaneseq
    %vm423 = vcmp.ge.s32.totalorder %v422, 0
    %vm424 = vcmp.lt.s32.totalorder %v422, 256
    %vm425 = vmand %vm423, %vm424
    %426 = vst.msk [vmem:[#allocation3] sm:$0x3] %vm425, %v420
    // Predicated region
    $region30: #{tpu_custom_call.1} parent=1 // pred_check
      _
    $region31: #{tpu_custom_call.1} parent=1 // pred_check_branch
      %428 = sbr.rel (0) target = $region33
    $region32: #{tpu_custom_call.1} parent=1 // pred_region
      %430 = vsyncadd [#allocation4], 0
      %s432 = sshll.u32 [#allocation3], 4
      %s433 = int_to_ptr.vmem [resolvable:$true] %s432
      %s434 = sshll.u32 %s7, 4
      %s435 = int_to_ptr.hbm [resolvable:$true] %s434
      %437 = dma.vmem_to_hbm [thread:$0]  %s433, 32, %s435, [#allocation4]
    $region33: #{tpu_custom_call.1} parent=1 // pred_fallthru
      _
    // Predicated region
    $region34: #{tpu_custom_call.1} parent=1 // pred_check
      _
    $region35: #{tpu_custom_call.1} parent=1 // pred_check_branch
      %439 = sbr.rel (0) target = $region37
    $region36: #{tpu_custom_call.1} parent=1 // pred_region
      %441 = dma.done [#allocation4], 32
    $region37: #{tpu_custom_call.1} parent=1 // pred_fallthru
      _
    %442 = vsyncpa [#allocation4], 1

</llo_original>
